<compile_context>
chip_gen: v6e
topology: v6e:2x2x1
jax: 0.10.0
libtpu: 0.0.40
codegen_flags: <defaults>
</compile_context>

<pallas_src>
import functools

import jax
import jax.numpy as jnp
from jax.experimental import pallas as pl
from jax.experimental.pallas import tpu as pltpu


# ---------------------------------------------------------------------------
# Kernels
# ---------------------------------------------------------------------------

def _transition_flat_kernel(x_ref, scale_ref, shift_ref, w_ref, o_ref, *,
                            mm_dtype):
    """Small-channel path: everything stays in a lane-dense (rows, W*C) layout.

    x_ref     : (TB, H, W*Cin)          NHWC image with (W, Cin) folded onto lanes
    scale_ref : (1, 1, W*Cin)           BN scale, tiled across W
    shift_ref : (1, 1, W*Cin)           BN shift, tiled across W
    w_ref     : (W*Cin, (W-1)*Cout)     banded block weight: 1x1 conv + W-direction
                                        pool tap + 1/4 divisor all folded in
    o_ref     : (TB, H-1, (W-1)*Cout)   pooled output, lane-dense store
    """
    tb, h, wcin = x_ref.shape
    owc = w_ref.shape[1]                                 # (W-1) * Cout

    # BatchNorm (inference) + ReLU, fully lane-dense on the VPU.
    xb = jnp.maximum(x_ref[...] * scale_ref[...] + shift_ref[...], 0.0)

    # 1x1 conv AND the W-direction 2-tap average as a single MXU matmul against
    # the banded block weight; no lane-axis relayouts needed afterwards.
    lhs = xb.reshape(tb * h, wcin).astype(mm_dtype)
    u = jnp.dot(lhs, w_ref[...], preferred_element_type=jnp.float32)
    u = u.reshape(tb, h, owc)

    # Remaining H-direction average: one sublane-shifted add.
    o_ref[...] = (u[:, :-1, :] + u[:, 1:, :]).astype(o_ref.dtype)


def _transition_kernel(x_ref, scale_ref, shift_ref, w_ref, o_ref, *, mm_dtype):
    """General path (channels on the lane axis).

    x_ref     : (TB, H, W, Cin)
    scale_ref : (1, 1, 1, Cin)
    shift_ref : (1, 1, 1, Cin)
    w_ref     : (Cin, Cout)             (0.25 pool divisor folded in)
    o_ref     : (TB, H-1, W-1, Cout)
    """
    tb, h, w, cin = x_ref.shape
    cout = w_ref.shape[1]

    xb = jnp.maximum(x_ref[...] * scale_ref[...] + shift_ref[...], 0.0)

    lhs = xb.reshape(tb * h * w, cin).astype(mm_dtype)
    z = jnp.dot(lhs, w_ref[...], preferred_element_type=jnp.float32)
    z = z.reshape(tb, h, w, cout)

    # Separable stride-1 2x2 average pool: H-add first (outside the tiled dims),
    # then the W (sublane-shift) add on the already-halved row count.
    t = z[:, :-1, :, :] + z[:, 1:, :, :]
    o_ref[...] = (t[:, :, :-1, :] + t[:, :, 1:, :]).astype(o_ref.dtype)


# ---------------------------------------------------------------------------
# Wrappers
# ---------------------------------------------------------------------------

def _pick_batch_tile(n, per_image_bytes, vmem_budget=8 << 20):
    # Keep at least two grid steps when n >= 2 so both v7x TensorCores stay fed,
    # but pack batch elements per step (up to a VMEM budget) to amortize the
    # ~0.35us per-grid-step overhead on small feature maps.
    target = max(1, n // min(n, 2))
    best = 1
    for cand in range(1, target + 1):
        if n % cand == 0 and cand * per_image_bytes <= vmem_budget:
            best = cand
    return best


def no_shrunken_transition_nhwc(x_nhwc, gamma, beta, running_mean, running_var,
                                conv_w, eps=1e-5, *, mm_dtype=jnp.bfloat16,
                                prefer_flat=True):
    """NHWC entry point (preferred: avoids NCHW<->NHWC HBM round trips)."""
    N, H, W, Cin = x_nhwc.shape
    Cout = conv_w.shape[0]
    assert H >= 2 and W >= 2, "stride-1 2x2 pool needs H, W >= 2"
    assert conv_w.shape == (Cout, Cin, 1, 1)

    # Fold BN (inference) into an affine, and the 1/4 pool divisor into the
    # 1x1-conv weight (removes a VPU multiply over the whole output).
    scale = gamma / jnp.sqrt(running_var + eps)
    shift = beta - running_mean * scale
    w = conv_w.reshape(Cout, Cin).T * 0.25                    # (Cin, Cout), f32

    per_image_bytes = 8 * H * W * (Cin + Cout) * 4            # rough VMEM/image
    tb = _pick_batch_tile(N, per_image_bytes)
    grid = (N // tb,)
    vmem_limit = int(min(48 << 20, max(32 << 20, 3 * tb * per_image_bytes)))
    cparams = pltpu.CompilerParams(dimension_semantics=("parallel",),
                                   vmem_limit_bytes=vmem_limit)
    # TODO(synk): for very large H*W*Cin, add a second row-tiled grid axis with a
    # 1-row halo to bound VMEM further and add spatial parallelism on v7x.

    flat_w_bytes = (W * Cin) * ((W - 1) * Cout) * 2           # bf16 weight bytes
    use_flat = (prefer_flat and Cin < 128 and Cout < 128
                and W * Cin <= 512 and flat_w_bytes <= (1 << 20))

    if use_flat:
        # Lane-dense small-channel path: fold (W, C) onto the 128-wide lane axis
        # for BN/ReLU, the matmul and the output store, so narrow channel counts
        # do not leave most lanes masked.
        x_in = x_nhwc.reshape(N, H, W * Cin)                  # free NHWC reshape
        scale_in = jnp.tile(scale, W).reshape(1, 1, W * Cin)
        shift_in = jnp.tile(shift, W).reshape(1, 1, W * Cin)
        # Banded selector folds the W-direction 2-tap average into the matmul:
        # weight block (wi, wj) is 0.25*w iff wi in {wj, wj+1}, else 0.
        sel = (jnp.eye(W, W - 1, dtype=w.dtype)
               + jnp.eye(W, W - 1, k=-1, dtype=w.dtype))
        w_in = jnp.kron(sel, w).astype(mm_dtype)              # (W*Cin,(W-1)*Cout)

        out_flat = pl.pallas_call(
            functools.partial(_transition_flat_kernel, mm_dtype=mm_dtype),
            out_shape=jax.ShapeDtypeStruct((N, H - 1, (W - 1) * Cout),
                                           x_nhwc.dtype),
            grid=grid,
            in_specs=[
                pl.BlockSpec((tb, H, W * Cin), lambda n: (n, 0, 0)),
                pl.BlockSpec((1, 1, W * Cin), lambda n: (0, 0, 0)),
                pl.BlockSpec((1, 1, W * Cin), lambda n: (0, 0, 0)),
                pl.BlockSpec((W * Cin, (W - 1) * Cout), lambda n: (0, 0)),
            ],
            out_specs=pl.BlockSpec((tb, H - 1, (W - 1) * Cout),
                                   lambda n: (n, 0, 0)),
            compiler_params=cparams,
        )(x_in, scale_in, shift_in, w_in)
        return out_flat.reshape(N, H - 1, W - 1, Cout)        # free reshape

    out = pl.pallas_call(
        functools.partial(_transition_kernel, mm_dtype=mm_dtype),
        out_shape=jax.ShapeDtypeStruct((N, H - 1, W - 1, Cout), x_nhwc.dtype),
        grid=grid,
        in_specs=[
            pl.BlockSpec((tb, H, W, Cin), lambda n: (n, 0, 0, 0)),
            pl.BlockSpec((1, 1, 1, Cin), lambda n: (0, 0, 0, 0)),
            pl.BlockSpec((1, 1, 1, Cin), lambda n: (0, 0, 0, 0)),
            pl.BlockSpec((Cin, Cout), lambda n: (0, 0)),
        ],
        out_specs=pl.BlockSpec((tb, H - 1, W - 1, Cout), lambda n: (n, 0, 0, 0)),
        compiler_params=cparams,
    )(x_nhwc, scale.reshape(1, 1, 1, Cin), shift.reshape(1, 1, 1, Cin),
      w.astype(mm_dtype))
    return out


def no_shrunken_transition(x_nchw, gamma, beta, running_mean, running_var,
                           conv_w, eps=1e-5, *, mm_dtype=jnp.bfloat16,
                           prefer_flat=True):
    """PyTorch-layout entry: (N, Cin, H, W) -> (N, Cout, H-1, W-1).

    NHWC pipelines should call `no_shrunken_transition_nhwc` directly — each
    layout transpose here is a full extra HBM read+write of the tensor.
    """
    x_nhwc = jnp.transpose(x_nchw, (0, 2, 3, 1))
    out_nhwc = no_shrunken_transition_nhwc(
        x_nhwc, gamma, beta, running_mean, running_var, conv_w, eps,
        mm_dtype=mm_dtype, prefer_flat=prefer_flat)
    return jnp.transpose(out_nhwc, (0, 3, 1, 2))


# ---------------------------------------------------------------------------
# Self-test
# ---------------------------------------------------------------------------

if __name__ == "__main__":
    key = jax.random.PRNGKey(0)
    N, Cin, H, W = 2, 8, 16, 16
    Cout = Cin // 2                       # DenseNet transition halves channels
    eps = 1e-5

    ks = jax.random.split(key, 6)
    x = jax.random.normal(ks[0], (N, Cin, H, W), jnp.float32)
    gamma = 1.0 + 0.1 * jax.random.normal(ks[1], (Cin,), jnp.float32)
    beta = 0.1 * jax.random.normal(ks[2], (Cin,), jnp.float32)
    running_mean = 0.1 * jax.random.normal(ks[3], (Cin,), jnp.float32)
    running_var = jax.random.uniform(ks[4], (Cin,), jnp.float32,
                                     minval=0.5, maxval=1.5)
    conv_w = 0.1 * jax.random.normal(ks[5], (Cout, Cin, 1, 1), jnp.float32)

    # Pure-JAX f32 reference (PyTorch eval-mode semantics).
    scale = gamma / jnp.sqrt(running_var + eps)
    shift = beta - running_mean * scale
    xb = jnp.maximum(x * scale[None, :, None, None]
                     + shift[None, :, None, None], 0.0)
    z = jnp.einsum('nchw,oc->nohw', xb, conv_w.reshape(Cout, Cin))
    ref = 0.25 * (z[:, :, :-1, :-1] + z[:, :, 1:, :-1] +
                  z[:, :, :-1, 1:] + z[:, :, 1:, 1:])

    # Small-channel lane-dense path (auto-selected for these shapes).
    out_flat = no_shrunken_transition(x, gamma, beta, running_mean,
                                      running_var, conv_w, eps)
    out_flat = jax.block_until_ready(out_flat)
    # General path (channels on lanes), exercised too so both paths stay tested.
    out_gen = no_shrunken_transition(x, gamma, beta, running_mean,
                                     running_var, conv_w, eps,
                                     prefer_flat=False)
    out_gen = jax.block_until_ready(out_gen)

    assert out_flat.shape == (N, Cout, H - 1, W - 1), out_flat.shape
    assert out_gen.shape == (N, Cout, H - 1, W - 1), out_gen.shape
    # bf16 MXU inputs with f32 accumulation -> tolerance widened vs pure f32.
    assert jnp.allclose(out_flat, ref, atol=2e-2, rtol=2e-2), \
        float(jnp.max(jnp.abs(out_flat - ref)))
    assert jnp.allclose(out_gen, ref, atol=2e-2, rtol=2e-2), \
        float(jnp.max(jnp.abs(out_gen - ref)))
    print("KERNEL_OK")
</pallas_src>

<mosaic_0001>
module attributes {stable_mosaic.version = 11 : i64} {
  func.func @_transition_flat_kernel(%arg0: i32, %arg1: memref<1x16x128xf32, #tpu.memory_space<vmem>>, %arg2: memref<1x1x128xf32, #tpu.memory_space<vmem>>, %arg3: memref<1x1x128xf32, #tpu.memory_space<vmem>>, %arg4: memref<128x60xbf16, #tpu.memory_space<vmem>>, %arg5: memref<1x15x60xf32, #tpu.memory_space<vmem>>) attributes {dimension_semantics = [#tpu.dimension_semantics<parallel>], iteration_bounds = array<i64: 2>, scalar_prefetch = 0 : i64, scratch_operands = 0 : i64, tpu.core_type = #tpu.core_type<tc>, window_params = [{transform_indices = @transform_0, window_bounds = array<i64: 1, 16, 128>}, {pipeline_mode = #tpu.pipeline_mode<synchronous>, transform_indices = @transform_1, window_bounds = array<i64: 1, 1, 128>}, {pipeline_mode = #tpu.pipeline_mode<synchronous>, transform_indices = @transform_2, window_bounds = array<i64: 1, 1, 128>}, {pipeline_mode = #tpu.pipeline_mode<synchronous>, transform_indices = @transform_3, window_bounds = array<i64: 128, 60>}, {transform_indices = @transform_4, window_bounds = array<i64: 1, 15, 60>}]} {
    %c0 = arith.constant 0 : index
    %c0_0 = arith.constant 0 : index
    %c0_1 = arith.constant 0 : index
    %0 = vector.load %arg1[%c0, %c0_0, %c0_1] : memref<1x16x128xf32, #tpu.memory_space<vmem>>, vector<1x16x128xf32>
    %c0_2 = arith.constant 0 : index
    %c0_3 = arith.constant 0 : index
    %c0_4 = arith.constant 0 : index
    %1 = vector.load %arg2[%c0_2, %c0_3, %c0_4] : memref<1x1x128xf32, #tpu.memory_space<vmem>>, vector<1x1x128xf32>
    %2 = vector.broadcast %1 : vector<1x1x128xf32> to vector<1x16x128xf32>
    %3 = arith.mulf %0, %2 : vector<1x16x128xf32>
    %c0_5 = arith.constant 0 : index
    %c0_6 = arith.constant 0 : index
    %c0_7 = arith.constant 0 : index
    %4 = vector.load %arg3[%c0_5, %c0_6, %c0_7] : memref<1x1x128xf32, #tpu.memory_space<vmem>>, vector<1x1x128xf32>
    %5 = vector.broadcast %4 : vector<1x1x128xf32> to vector<1x16x128xf32>
    %6 = arith.addf %3, %5 : vector<1x16x128xf32>
    %cst = arith.constant 0.000000e+00 : f32
    %7 = vector.broadcast %cst : f32 to vector<1x16x128xf32>
    %8 = arith.maximumf %6, %7 : vector<1x16x128xf32>
    %9 = vector.shape_cast %8 : vector<1x16x128xf32> to vector<16x128xf32>
    %10 = arith.truncf %9 : vector<16x128xf32> to vector<16x128xbf16>
    %c0_8 = arith.constant 0 : index
    %c0_9 = arith.constant 0 : index
    %11 = vector.load %arg4[%c0_8, %c0_9] : memref<128x60xbf16, #tpu.memory_space<vmem>>, vector<128x60xbf16>
    %cst_10 = arith.constant dense<0.000000e+00> : vector<16x60xf32>
    %12 = tpu.matmul %10, %11, %cst_10 {dimension_numbers = #tpu.dot_dimension_numbers<[1], [0], [0], [1], [0, 0, 1, 1], [], []>} : vector<16x128xbf16>, vector<128x60xbf16>, vector<16x60xf32> -> vector<16x60xf32>
    %13 = vector.shape_cast %12 : vector<16x60xf32> to vector<1x16x60xf32>
    %14 = vector.extract_strided_slice %13 {offsets = [0, 0, 0], sizes = [1, 15, 60], strides = [1, 1, 1]} : vector<1x16x60xf32> to vector<1x15x60xf32>
    %15 = vector.extract_strided_slice %13 {offsets = [0, 1, 0], sizes = [1, 15, 60], strides = [1, 1, 1]} : vector<1x16x60xf32> to vector<1x15x60xf32>
    %16 = arith.addf %14, %15 : vector<1x15x60xf32>
    %c0_11 = arith.constant 0 : index
    %c0_12 = arith.constant 0 : index
    %c0_13 = arith.constant 0 : index
    %17 = vector.load %arg5[%c0_11, %c0_12, %c0_13] : memref<1x15x60xf32, #tpu.memory_space<vmem>>, vector<1x15x60xf32>
    tpu.vector_store %arg5[%c0_11, %c0_12, %c0_13], %16 {strides = array<i32>} : memref<1x15x60xf32, #tpu.memory_space<vmem>>, vector<1x15x60xf32>,
    return
  }
  func.func @transform_0(%arg0: i32) -> (i32, i32, i32) {
    %c0_i32 = arith.constant 0 : i32
    %c0_i32_0 = arith.constant 0 : i32
    %c0_i32_1 = arith.constant 0 : i32
    return %arg0, %c0_i32, %c0_i32_0 : i32, i32, i32
  }
  func.func @transform_1(%arg0: i32) -> (i32, i32, i32) {
    %c0_i32 = arith.constant 0 : i32
    %c0_i32_0 = arith.constant 0 : i32
    %c0_i32_1 = arith.constant 0 : i32
    %c0_i32_2 = arith.constant 0 : i32
    return %c0_i32, %c0_i32_0, %c0_i32_1 : i32, i32, i32
  }
  func.func @transform_2(%arg0: i32) -> (i32, i32, i32) {
    %c0_i32 = arith.constant 0 : i32
    %c0_i32_0 = arith.constant 0 : i32
    %c0_i32_1 = arith.constant 0 : i32
    %c0_i32_2 = arith.constant 0 : i32
    return %c0_i32, %c0_i32_0, %c0_i32_1 : i32, i32, i32
  }
  func.func @transform_3(%arg0: i32) -> (i32, i32) {
    %c0_i32 = arith.constant 0 : i32
    %c0_i32_0 = arith.constant 0 : i32
    %c0_i32_1 = arith.constant 0 : i32
    return %c0_i32, %c0_i32_0 : i32, i32
  }
  func.func @transform_4(%arg0: i32) -> (i32, i32, i32) {
    %c0_i32 = arith.constant 0 : i32
    %c0_i32_0 = arith.constant 0 : i32
    %c0_i32_1 = arith.constant 0 : i32
    return %arg0, %c0_i32, %c0_i32_0 : i32, i32, i32
  }
}

</mosaic_0001>

<llo_original>
// kernel: tpu_custom_call.1
$region0: #{tpu_custom_call.1}
  #allocation0 [shape = 'u32[]', space=smem, size = 0x4, offset = 0x4, fixed_abs, tag = 'smem constant byte address 0x4 - core index']
  #allocation1 [shape = 'u32[144,128]{1,0:T(1,128)}', space=vmem, size = 0x12000, scoped, tag = 'internal scratch']
  %s0 = inlined_call_operand.vmem [shape: f32[2,16,128], index: 0, kind: input, shape index: {}]
  %s1 = inlined_call_operand.vmem [shape: f32[1,1,128], index: 1, kind: input, shape index: {}]
  %s2 = inlined_call_operand.vmem [shape: f32[1,1,128], index: 2, kind: input, shape index: {}]
  %s3 = inlined_call_operand.vmem [shape: bf16[128,60], index: 3, kind: input, shape index: {}]
  %s4 = inlined_call_operand.vmem [shape: f32[2,15,60], index: 4, kind: output, shape index: {}]
  %s5 = sld [smem:[#allocation0]]
  $region49: #{tpu_custom_call.1} parent=0
    _
  %s7 = ssub.s32 1, %s5
  %s8 = scalar_select 0, %s7, %s5
  loop: start=0, step=1, limit=4
  $region2: #{tpu_custom_call.1} parent=0 // loop_pre_header
    _
  $region3: #{tpu_custom_call.1} parent=0 // loop_header
    %s10 = sphi 0, %s14
    %p11 = scmp.ge.s32.totalorder %s10, 4
    %s20 = sphi 0, %s22
    %s23 = sphi 0, %s20
    %s24 = sphi 0, %s23
    %s40 = sphi 0, %s24
    %s44 = sphi 0, %s44
    %s46 = sphi 0, %s44
    %s47 = sphi 0, %s46
    %s61 = sphi 0, %s47
    %s65 = sphi 0, %s65
    %s67 = sphi 0, %s65
    %s68 = sphi 0, %s67
    %s82 = sphi 0, %s68
    %s86 = sphi 0, %s86
    %s88 = sphi 0, %s86
    %s89 = sphi 0, %s88
    %s103 = sphi 0, %s89
    %s109 = sphi 0, %s111
    %s112 = sphi 0, %s109
    %s113 = sphi 0, %s112
    %s129 = sphi 0, %s113
  $region4: #{tpu_custom_call.1} parent=0 // loop_header_branch
    %13 = sbr.rel (%p11) target = $region8
  $region5: #{tpu_custom_call.1} parent=0 // loop_body
    %s15 = ssub.s32 %s10, 1
    %s16 = ssub.s32 %s10, 2
    %s17 = sadd.s32 %s10, 1
    %s18 = ssub.s32 %s10, %s17
    %p19 = scmp.eq.s32.totalorder %s18, 0
    %s21 = sadd.s32 %s20, 1
    %s22 = scalar_select %p19, %s20, %s21
    %p25 = pneg %p19
    %p26 = scmp.eq.s32.totalorder %s10, 1
    %p27 = por %p25, %p26
    %p28 = scmp.ne.s32.totalorder %s20, %s23
    %p29 = scmp.eq.s32.totalorder %s10, 0
    %p30 = por %p28, %p29
    %p31 = scmp.ne.s32.totalorder %s20, %s23
    %p32 = scmp.eq.s32.totalorder %s15, 1
    %p33 = por %p31, %p32
    %p34 = scmp.ne.s32.totalorder %s23, %s24
    %p35 = scmp.eq.s32.totalorder %s15, 0
    %p36 = por %p34, %p35
    %p37 = scmp.ne.s32.totalorder %s23, %s24
    %p38 = scmp.eq.s32.totalorder %s16, 1
    %p39 = por %p37, %p38
    %p41 = scmp.ne.s32.totalorder %s24, %s40
    %p42 = scmp.eq.s32.totalorder %s16, 0
    %p43 = por %p41, %p42
    %s45 = sadd.s32 %s44, 1
    %p48 = scmp.eq.s32.totalorder %s10, 1
    %p49 = scmp.ne.s32.totalorder %s44, %s46
    %p50 = scmp.eq.s32.totalorder %s10, 0
    %p51 = por %p49, %p50
    %p52 = scmp.ne.s32.totalorder %s44, %s46
    %p53 = scmp.eq.s32.totalorder %s15, 1
    %p54 = por %p52, %p53
    %p55 = scmp.ne.s32.totalorder %s46, %s47
    %p56 = scmp.eq.s32.totalorder %s15, 0
    %p57 = por %p55, %p56
    %p58 = scmp.ne.s32.totalorder %s46, %s47
    %p59 = scmp.eq.s32.totalorder %s16, 1
    %p60 = por %p58, %p59
    %p62 = scmp.ne.s32.totalorder %s47, %s61
    %p63 = scmp.eq.s32.totalorder %s16, 0
    %p64 = por %p62, %p63
    %s66 = sadd.s32 %s65, 1
    %p69 = scmp.eq.s32.totalorder %s10, 1
    %p70 = scmp.ne.s32.totalorder %s65, %s67
    %p71 = scmp.eq.s32.totalorder %s10, 0
    %p72 = por %p70, %p71
    %p73 = scmp.ne.s32.totalorder %s65, %s67
    %p74 = scmp.eq.s32.totalorder %s15, 1
    %p75 = por %p73, %p74
    %p76 = scmp.ne.s32.totalorder %s67, %s68
    %p77 = scmp.eq.s32.totalorder %s15, 0
    %p78 = por %p76, %p77
    %p79 = scmp.ne.s32.totalorder %s67, %s68
    %p80 = scmp.eq.s32.totalorder %s16, 1
    %p81 = por %p79, %p80
    %p83 = scmp.ne.s32.totalorder %s68, %s82
    %p84 = scmp.eq.s32.totalorder %s16, 0
    %p85 = por %p83, %p84
    %s87 = sadd.s32 %s86, 1
    %p90 = scmp.eq.s32.totalorder %s10, 1
    %p91 = scmp.ne.s32.totalorder %s86, %s88
    %p92 = scmp.eq.s32.totalorder %s10, 0
    %p93 = por %p91, %p92
    %p94 = scmp.ne.s32.totalorder %s86, %s88
    %p95 = scmp.eq.s32.totalorder %s15, 1
    %p96 = por %p94, %p95
    %p97 = scmp.ne.s32.totalorder %s88, %s89
    %p98 = scmp.eq.s32.totalorder %s15, 0
    %p99 = por %p97, %p98
    %p100 = scmp.ne.s32.totalorder %s88, %s89
    %p101 = scmp.eq.s32.totalorder %s16, 1
    %p102 = por %p100, %p101
    %p104 = scmp.ne.s32.totalorder %s89, %s103
    %p105 = scmp.eq.s32.totalorder %s16, 0
    %p106 = por %p104, %p105
    %s107 = ssub.s32 %s10, %s17
    %p108 = scmp.eq.s32.totalorder %s107, 0
    %s110 = sadd.s32 %s109, 1
    %s111 = scalar_select %p108, %s109, %s110
    %p114 = pneg %p108
    %p115 = scmp.eq.s32.totalorder %s10, 1
    %p116 = por %p114, %p115
    %p117 = scmp.ne.s32.totalorder %s109, %s112
    %p118 = scmp.eq.s32.totalorder %s10, 0
    %p119 = por %p117, %p118
    %p120 = scmp.ne.s32.totalorder %s109, %s112
    %p121 = scmp.eq.s32.totalorder %s15, 1
    %p122 = por %p120, %p121
    %p123 = scmp.ne.s32.totalorder %s112, %s113
    %p124 = scmp.eq.s32.totalorder %s15, 0
    %p125 = por %p123, %p124
    %p126 = scmp.ne.s32.totalorder %s112, %s113
    %p127 = scmp.eq.s32.totalorder %s16, 1
    %p128 = por %p126, %p127
    %p130 = scmp.ne.s32.totalorder %s113, %s129
    %p131 = scmp.eq.s32.totalorder %s16, 0
    %p132 = por %p130, %p131
    %p133 = scmp.le.s32.totalorder 1, %s10
    %p134 = scmp.lt.s32.totalorder %s10, 3
    %p135 = pnand %p133, %p134
    %p136 = pneg %p135
    // Predicated region
    $region9: #{tpu_custom_call.1} parent=5 // pred_check
      _
    $region10: #{tpu_custom_call.1} parent=5 // pred_check_branch
      %138 = sbr.rel (%p135) target = $region12
    $region11: #{tpu_custom_call.1} parent=5 // pred_region
      %s139 = ssub.s32 %s10, 1
      // Predicated region
      $region13: #{tpu_custom_call.1} parent=11 // pred_check
        %p140 = pneg %p57
      $region14: #{tpu_custom_call.1} parent=11 // pred_check_branch
        %142 = sbr.rel (%p140) target = $region16
      $region15: #{tpu_custom_call.1} parent=11 // pred_region
        _
      $region16: #{tpu_custom_call.1} parent=11 // pred_fallthru
        _
      // Predicated region
      $region17: #{tpu_custom_call.1} parent=11 // pred_check
        %p143 = pneg %p78
      $region18: #{tpu_custom_call.1} parent=11 // pred_check_branch
        %145 = sbr.rel (%p143) target = $region20
      $region19: #{tpu_custom_call.1} parent=11 // pred_region
        _
      $region20: #{tpu_custom_call.1} parent=11 // pred_fallthru
        _
      // Predicated region
      $region21: #{tpu_custom_call.1} parent=11 // pred_check
        %p146 = pneg %p99
      $region22: #{tpu_custom_call.1} parent=11 // pred_check_branch
        %148 = sbr.rel (%p146) target = $region24
      $region23: #{tpu_custom_call.1} parent=11 // pred_region
        _
      $region24: #{tpu_custom_call.1} parent=11 // pred_fallthru
        _
    $region12: #{tpu_custom_call.1} parent=5 // pred_fallthru
      _
    %p149 = scmp.lt.s32.totalorder %s10, 2
    // Predicated region
    $region25: #{tpu_custom_call.1} parent=5 // pred_check
      %p150 = pneg %p149
    $region26: #{tpu_custom_call.1} parent=5 // pred_check_branch
      %152 = sbr.rel (%p150) target = $region28
    $region27: #{tpu_custom_call.1} parent=5 // pred_region
      // Predicated region
      $region29: #{tpu_custom_call.1} parent=27 // pred_check
        %p153 = pneg %p30
      $region30: #{tpu_custom_call.1} parent=27 // pred_check_branch
        %155 = sbr.rel (%p153) target = $region32
      $region31: #{tpu_custom_call.1} parent=27 // pred_region
        %p156 = scmp.lt.s32.totalorder %s10, 1
        %s157 = scalar_select %p156, %s10, 1
        %s158 = smul.addr %s157, 2
        %s159 = smul.addr %s158, 8
        %s160 = scalar_lea.vmem %s0, %s159
      $region32: #{tpu_custom_call.1} parent=27 // pred_fallthru
        _
    $region28: #{tpu_custom_call.1} parent=5 // pred_fallthru
      _
    %p161 = scmp.le.s32.totalorder 1, %s10
    %p162 = scmp.lt.s32.totalorder %s10, 3
    %p163 = pnand %p161, %p162
    %p164 = pneg %p163
    // Predicated region
    $region33: #{tpu_custom_call.1} parent=5 // pred_check
      _
    $region34: #{tpu_custom_call.1} parent=5 // pred_check_branch
      %166 = sbr.rel (%p163) target = $region36
    $region35: #{tpu_custom_call.1} parent=5 // pred_region
      %s167 = ssub.s32 %s10, 1
      %p168 = scmp.lt.s32.totalorder %s15, 1
      %s169 = scalar_select %p168, %s15, 1
      %s170 = smul.addr %s169, 2
      %s171 = smul.addr %s170, 8
      %s172 = scalar_lea.vmem %s0, %s171
      %p173 = pneg %p36
      %p174 = pneg %p33
      %p175 = pneg %p57
      %p176 = pneg %p54
      %p177 = pneg %p78
      %p178 = pneg %p75
      %p179 = pneg %p99
      %p180 = pneg %p96
      %p181 = pneg %p125
      %p182 = pneg %p122
      %p183 = scmp.lt.s32.totalorder %s15, 1
      %s184 = scalar_select %p183, %s15, 1
      %s185 = smul.addr %s184, 2
      %s186 = smul.addr %s185, 8
      %s187 = scalar_lea.vmem %s4, %s186
      %p188 = scmp.lt.s32.totalorder %s15, 1
      %s189 = scalar_select %p188, %s15, 1
      %s190 = smul.addr %s189, 2
      %s191 = smul.addr %s190, 8
      %s192 = scalar_lea.vmem %s0, %s191
      %p193 = scmp.lt.s32.totalorder %s15, 1
      %s194 = scalar_select %p193, %s15, 1
      %s195 = smul.addr %s194, 2
      %s196 = smul.addr %s195, 8
      %s197 = scalar_lea.vmem %s4, %s196
      %v199 = vld [vmem:[%s192] sm:$0xff]
      %v200 = vld [vmem:[%s192 + $0x8] sm:$0xff]
      %v201 = vld [vmem:[%s1] sm:$0x1]
      %v203 = vlaneseq
      %v204 = vshrl.u32 %v203, 7
      %v205 = vsub.s32 0, %v204
      %v206 = vrot.slane %v201, %v205
      %v208 = vmul.f32 %v199, %v206
      %v209 = vmul.f32 %v200, %v206
      %v210 = vld [vmem:[%s2] sm:$0x1]
      %v212 = vlaneseq
      %v213 = vshrl.u32 %v212, 7
      %v214 = vsub.s32 0, %v213
      %v215 = vrot.slane %v210, %v214
      %v217 = vadd.f32 %v208, %v215
      %v218 = vadd.f32 %v209, %v215
      %v219 = vmax.f32 %v217, 0.0
      %v220 = vmax.f32 %v218, 0.0
      %v221 = vpack.c.bf16 %v220, %v219
      %v222 = vld [vmem:[%s3] sm:$0xf]
      %v223 = vld [vmem:[%s3 + $0x4] sm:$0xf]
      %v224 = vld [vmem:[%s3 + $0x8] sm:$0xf]
      %v225 = vld [vmem:[%s3 + $0xc] sm:$0xf]
      %v226 = vld [vmem:[%s3 + $0x10] sm:$0xf]
      %v227 = vld [vmem:[%s3 + $0x14] sm:$0xf]
      %v228 = vld [vmem:[%s3 + $0x18] sm:$0xf]
      %v229 = vld [vmem:[%s3 + $0x1c] sm:$0xf]
      %v230 = vld [vmem:[%s3 + $0x20] sm:$0xf]
      %v231 = vld [vmem:[%s3 + $0x24] sm:$0xf]
      %v232 = vld [vmem:[%s3 + $0x28] sm:$0xf]
      %v233 = vld [vmem:[%s3 + $0x2c] sm:$0xf]
      %v234 = vld [vmem:[%s3 + $0x30] sm:$0xf]
      %v235 = vld [vmem:[%s3 + $0x34] sm:$0xf]
      %v236 = vld [vmem:[%s3 + $0x38] sm:$0xf]
      %v237 = vld [vmem:[%s3 + $0x3c] sm:$0xf]
      %v254 = vunpack.c.l.b16 %v222
      %v255 = vunpack.c.l.b16 %v223
      %v256 = vunpack.c.l.b16 %v224
      %v257 = vunpack.c.l.b16 %v225
      %v258 = vunpack.c.l.b16 %v226
      %v259 = vunpack.c.l.b16 %v227
      %v260 = vunpack.c.l.b16 %v228
      %v261 = vunpack.c.l.b16 %v229
      %v262 = vunpack.c.l.b16 %v230
      %v263 = vunpack.c.l.b16 %v231
      %v264 = vunpack.c.l.b16 %v232
      %v265 = vunpack.c.l.b16 %v233
      %v266 = vunpack.c.l.b16 %v234
      %v267 = vunpack.c.l.b16 %v235
      %v268 = vunpack.c.l.b16 %v236
      %v269 = vunpack.c.l.b16 %v237
      %v270 = vpack.c.b16 %v255, %v254
      %v271 = vpack.c.b16 %v257, %v256
      %v272 = vpack.c.b16 %v259, %v258
      %v273 = vpack.c.b16 %v261, %v260
      %v274 = vpack.c.b16 %v263, %v262
      %v275 = vpack.c.b16 %v265, %v264
      %v276 = vpack.c.b16 %v267, %v266
      %v277 = vpack.c.b16 %v269, %v268
      %286 = vmatprep.subr.bf16.mxu0 0
      %287 = vmatpush1.bf16.msra.mxu0 %v277
      %288 = vmatprep.subr.bf16.mxu0 0
      %289 = vmatpush1.bf16.msra.mxu0 %v276
      %290 = vmatprep.subr.bf16.mxu0 0
      %291 = vmatpush1.bf16.msra.mxu0 %v275
      %292 = vmatprep.subr.bf16.mxu0 0
      %293 = vmatpush1.bf16.msra.mxu0 %v274
      %294 = vmatprep.subr.bf16.mxu0 0
      %295 = vmatpush1.bf16.msra.mxu0 %v273
      %296 = vmatprep.subr.bf16.mxu0 0
      %297 = vmatpush1.bf16.msra.mxu0 %v272
      %298 = vmatprep.subr.bf16.mxu0 0
      %299 = vmatpush1.bf16.msra.mxu0 %v271
      %300 = vmatprep.subr.bf16.mxu0 0
      %301 = vmatpush1.bf16.msra.mxu0 %v270
      %302 = vmatprep.subr.bf16.mxu0 0
      %303 = vmatpush2.bf16.msra.mxu0 0
      %304 = vmatprep.subr.bf16.mxu0 0
      %305 = vmatpush2.bf16.msra.mxu0 0
      %306 = vmatprep.subr.bf16.mxu0 0
      %307 = vmatpush2.bf16.msra.mxu0 0
      %308 = vmatprep.subr.bf16.mxu0 0
      %309 = vmatpush2.bf16.msra.mxu0 0
      %310 = vmatprep.subr.bf16.mxu0 0
      %311 = vmatpush2.bf16.msra.mxu0 0
      %312 = vmatprep.subr.bf16.mxu0 0
      %313 = vmatpush2.bf16.msra.mxu0 0
      %314 = vmatprep.subr.bf16.mxu0 0
      %315 = vmatpush2.bf16.msra.mxu0 0
      %316 = vmatprep.subr.bf16.mxu0 0
      %317 = vmatpush2.bf16.msra.mxu0 0
      %318 = vmatprep.mubr.bf16.mxu0 0
      %319 = vmatmul.mubr.bf16.gmra.mxu0 %v221
      %v320 = vpop.f32.mrf.mxu0
      %v321 = vadd.f32 0.0, %v320
      %v322 = vpop.f32.mrf.mxu0
      %v323 = vpop.f32.mrf.mxu0
      %v324 = vadd.f32 0.0, %v323
      %v325 = vpop.f32.mrf.mxu0
      %326 = vdwg.mxu0
      %vm329 = vcmask 1046528
      %v330 = vrot.slane %v321, 1
      %v331 = vrot.slane %v324, 1
      %v332 = vsel %vm329, %v330, %v331
      %v335 = vadd.f32 %v321, %v332
      %v336 = vadd.f32 %v324, %v331
      %vm337 = vcmask 490496
      %338 = vst.msk [vmem:[%s197] sm:$0xff] %vm337, %v335
      %vm339 = vcmask 489472
      %340 = vst.msk [vmem:[%s197 + $0x8] sm:$0x7f] %vm339, %v336
      %p341 = scmp.lt.s32.totalorder %s15, 1
      %s342 = scalar_select %p341, %s15, 1
      %s343 = smul.addr %s342, 2
      %s344 = smul.addr %s343, 8
      %s345 = scalar_lea.vmem %s4, %s344
      // Predicated region
      $region37: #{tpu_custom_call.1} parent=35 // pred_check
        %p346 = pneg %p122
      $region38: #{tpu_custom_call.1} parent=35 // pred_check_branch
        %348 = sbr.rel (%p346) target = $region40
      $region39: #{tpu_custom_call.1} parent=35 // pred_region
        _
      $region40: #{tpu_custom_call.1} parent=35 // pred_fallthru
        _
    $region36: #{tpu_custom_call.1} parent=5 // pred_fallthru
      _
    %p349 = scmp.le.s32.totalorder 2, %s10
    // Predicated region
    $region41: #{tpu_custom_call.1} parent=5 // pred_check
      %p350 = pneg %p349
    $region42: #{tpu_custom_call.1} parent=5 // pred_check_branch
      %352 = sbr.rel (%p350) target = $region44
    $region43: #{tpu_custom_call.1} parent=5 // pred_region
      %s353 = ssub.s32 %s10, 2
      // Predicated region
      $region45: #{tpu_custom_call.1} parent=43 // pred_check
        %p354 = pneg %p128
      $region46: #{tpu_custom_call.1} parent=43 // pred_check_branch
        %356 = sbr.rel (%p354) target = $region48
      $region47: #{tpu_custom_call.1} parent=43 // pred_region
        %p357 = scmp.lt.s32.totalorder %s16, 1
        %s358 = scalar_select %p357, %s16, 1
        %s359 = smul.addr %s358, 2
        %s360 = smul.addr %s359, 8
        %s361 = scalar_lea.vmem %s4, %s360
      $region48: #{tpu_custom_call.1} parent=43 // pred_fallthru
        _
    $region44: #{tpu_custom_call.1} parent=5 // pred_fallthru
      _
  $region6: #{tpu_custom_call.1} parent=0 // loop_footer
    %s14 = sadd.s32 1, %s10
  $region7: #{tpu_custom_call.1} parent=0 // loop_footer_branch
    %9 = sbr.rel target = $region3
  $region8: #{tpu_custom_call.1} parent=0 // loop_exit
    _

</llo_original>
